<compile_context>
chip_gen: v5e
topology: v5e:2x2
jax: 0.10.0
libtpu: 0.0.40
codegen_flags: <defaults>
</compile_context>

<pallas_src>
import functools

import jax
import jax.numpy as jnp
from jax import lax
from jax.experimental import pallas as pl
from jax.experimental.pallas import tpu as pltpu


# Total in-kernel VMEM budget used to size the row tile, and the scoped VMEM
# limit handed to Mosaic.  32 MiB of working set + 48 MiB limit fits v7x's
# 64 MiB-per-TensorCore VMEM with headroom and is well under v5e/v6e's 128 MiB.
_VMEM_BUDGET_BYTES = 32 * 1024 * 1024
_VMEM_LIMIT_BYTES = 48 * 1024 * 1024


def _auto_block_rows(n, c, itemsize):
    """Row-tile size from a VMEM byte budget (multiple of 8, clamped to N)."""
    # Per-row bytes: 2x double-buffered (TN, C) input tile + ~2 f32 (TN, C)
    # temporaries (cast, exp) + small (TN, <=2) side columns / accumulators.
    bytes_per_row = c * (2 * itemsize + 8) + 64
    rows = _VMEM_BUDGET_BYTES // bytes_per_row
    if n <= 8:
        return int(n)
    rows = max(8, min(int(rows), n))
    return int((rows // 8) * 8)


def _poly1_ce_partial_kernel(preds_ref, side_ref, out_ref,
                             acc_wnll, acc_w, acc_pt, *,
                             n_total, block_n, tiles_per_seg, needs_mask):
    p = pl.program_id(0)          # parallel segment (v7x: one per TensorCore)
    i = pl.program_id(1)          # row-tile step within the segment

    @pl.when(i == 0)
    def _init():
        acc_wnll[...] = jnp.zeros_like(acc_wnll)
        acc_w[...] = jnp.zeros_like(acc_w)
        acc_pt[...] = jnp.zeros_like(acc_pt)

    x = preds_ref[...]                               # (TN, C), native dtype
    true_logit = side_ref[:, 0:1]                    # (TN, 1) f32
    w = side_ref[:, 1:2]                             # (TN, 1) f32

    # Row max on the native dtype (exact for max; avoids a second full-width
    # f32 pass on bf16 inputs), then the exp/log path in f32.
    m = jnp.max(x, axis=-1, keepdims=True).astype(jnp.float32)    # (TN, 1)
    xf = x.astype(jnp.float32)
    s = jnp.sum(jnp.exp(xf - m), axis=-1, keepdims=True)          # (TN, 1)
    logsumexp = m + jnp.log(s)                                    # (TN, 1)

    nll = logsumexp - true_logit                     # (TN, 1)
    pt = jnp.exp(-nll)                               # softmax prob of true class
    wnll = w * nll

    def _accumulate(wnll_v, w_v, pt_v):
        acc_wnll[...] += jnp.sum(wnll_v, keepdims=True)           # (1, 1)
        acc_w[...] += jnp.sum(w_v, keepdims=True)
        acc_pt[...] += jnp.sum(pt_v, keepdims=True)

    if needs_mask:
        tile_idx = p * tiles_per_seg + i
        row0 = tile_idx * block_n

        @pl.when(row0 + block_n <= n_total)
        def _full_tile():
            _accumulate(wnll, w, pt)

        @pl.when(row0 + block_n > n_total)
        def _partial_or_oob_tile():
            row_ids = row0 + lax.broadcasted_iota(jnp.int32, (block_n, 1), 0)
            valid = row_ids < n_total
            # Keep these as selects: padded rows hold stale VMEM data that may
            # have produced inf/NaN above; a 0/1 multiply would not kill NaN.
            _accumulate(jnp.where(valid, wnll, 0.0),
                        jnp.where(valid, w, 0.0),
                        jnp.where(valid, pt, 0.0))
    else:
        _accumulate(wnll, w, pt)

    @pl.when(i == pl.num_programs(1) - 1)
    def _finalize():
        # Emit the three partial sums into rows 0/1/2 of this segment's
        # (8, 128) output slab (lane-dense, unmasked store).
        row = lax.broadcasted_iota(jnp.int32, (1, 8, 128), 1)
        out_ref[...] = jnp.where(
            row == 0, acc_wnll[...],
            jnp.where(row == 1, acc_w[...],
                      jnp.where(row == 2, acc_pt[...], 0.0)))


def poly1_cross_entropy(preds, labels, weight, *, epsilon=1.0,
                        size_average=True, block_rows=None, num_parallel=None):
    n, c = preds.shape
    labels = labels.astype(jnp.int32)

    # Side inputs computed once in the wrapper with tiny XLA gathers:
    #   column 0: true-class logit (removes the in-kernel one-hot pass)
    #   column 1: per-sample CE weight weight[label]
    # Packed into one (N, 2) array -> a single small per-tile DMA.
    true_logit = jnp.take_along_axis(preds, labels[:, None],
                                     axis=-1).astype(jnp.float32)   # (N, 1)
    w_per_sample = weight.astype(jnp.float32)[labels][:, None]      # (N, 1)
    side = jnp.concatenate([true_logit, w_per_sample], axis=-1)     # (N, 2)

    itemsize = jnp.dtype(preds.dtype).itemsize
    block_n = _auto_block_rows(n, c, itemsize) if block_rows is None \
        else int(block_rows)

    num_tiles = pl.cdiv(n, block_n)
    if num_parallel is None:
        num_parallel = 2 if num_tiles >= 2 else 1   # both v7x TensorCores
    num_parallel = max(1, min(int(num_parallel), int(num_tiles)))
    tiles_per_seg = pl.cdiv(num_tiles, num_parallel)
    needs_mask = (n % block_n != 0) or (tiles_per_seg * num_parallel != num_tiles)
    last_tile = num_tiles - 1

    def rows_map(p, i):
        # Clamp out-of-range tiles (uneven segment split) to the last real
        # tile; their rows are fully masked inside the kernel.
        return (jnp.minimum(p * tiles_per_seg + i, last_tile), 0)

    kernel = functools.partial(
        _poly1_ce_partial_kernel,
        n_total=int(n), block_n=int(block_n),
        tiles_per_seg=int(tiles_per_seg), needs_mask=bool(needs_mask))

    partials = pl.pallas_call(
        kernel,
        out_shape=jax.ShapeDtypeStruct((num_parallel, 8, 128), jnp.float32),
        grid_spec=pltpu.PrefetchScalarGridSpec(
            num_scalar_prefetch=0,
            grid=(num_parallel, tiles_per_seg),
            in_specs=[
                pl.BlockSpec((block_n, c), rows_map),    # logits tile
                pl.BlockSpec((block_n, 2), rows_map),    # [true_logit, w] tile
            ],
            out_specs=pl.BlockSpec((1, 8, 128), lambda p, i: (p, 0, 0)),
            scratch_shapes=[
                pltpu.VMEM((1, 1), jnp.float32),   # sum(w * nll)
                pltpu.VMEM((1, 1), jnp.float32),   # sum(w)
                pltpu.VMEM((1, 1), jnp.float32),   # sum(pt)
            ],
        ),
        compiler_params=pltpu.CompilerParams(
            dimension_semantics=("parallel", "arbitrary"),
            vmem_limit_bytes=_VMEM_LIMIT_BYTES),
    )(preds, side)

    # Combine the per-segment partials + finalize (tiny XLA ops).
    wnll_sum = jnp.sum(partials[:, 0, 0])
    w_sum = jnp.sum(partials[:, 1, 0])
    pt_sum = jnp.sum(partials[:, 2, 0])

    ce = wnll_sum / w_sum        # weighted-mean CE (PyTorch reduction='mean')
    n_f = jnp.float32(n)
    if size_average:
        # mean_i [ce + eps*(1 - pt_i)] = ce + eps*(1 - mean(pt))
        loss = ce + epsilon * (1.0 - pt_sum / n_f)
    else:
        # sum_i [ce + eps*(1 - pt_i)] = N*ce + eps*(N - sum(pt))
        loss = n_f * ce + epsilon * (n_f - pt_sum)
    return loss


def _reference(preds, labels, weight, epsilon, size_average):
    logp = jax.nn.log_softmax(preds.astype(jnp.float32), axis=-1)
    p = jnp.exp(logp)
    oh = jax.nn.one_hot(labels, preds.shape[-1], dtype=jnp.float32)
    pt = jnp.sum(oh * p, axis=-1)
    nll = -jnp.sum(oh * logp, axis=-1)
    w = weight[labels]
    ce = jnp.sum(w * nll) / jnp.sum(w)
    loss = ce + epsilon * (1.0 - pt)
    return loss.mean() if size_average else loss.sum()


if __name__ == "__main__":
    NUM_CLASSES = 5
    EPSILON = 1.0

    key = jax.random.PRNGKey(0)
    k1, k2, k3, k4 = jax.random.split(key, 4)
    weight = jnp.linspace(0.5, 1.5, NUM_CLASSES, dtype=jnp.float32)

    # Small shape consistent with the module (num_classes=5).
    n = 8
    preds = jax.random.normal(k1, (n, NUM_CLASSES), dtype=jnp.float32)
    labels = jax.random.randint(k2, (n,), 0, NUM_CLASSES, dtype=jnp.int32)

    loss = poly1_cross_entropy(preds, labels, weight, epsilon=EPSILON,
                               size_average=True)
    jax.block_until_ready(loss)
    ref = _reference(preds, labels, weight, EPSILON, True)
    assert jnp.allclose(loss, ref, rtol=1e-5, atol=1e-5), (loss, ref)

    # Also exercise the sum-reduction path.
    loss_sum = poly1_cross_entropy(preds, labels, weight, epsilon=EPSILON,
                                   size_average=False)
    jax.block_until_ready(loss_sum)
    ref_sum = _reference(preds, labels, weight, EPSILON, False)
    assert jnp.allclose(loss_sum, ref_sum, rtol=1e-5, atol=1e-5), (loss_sum, ref_sum)

    # Stress the tiled / two-segment / masked path at a small shape by forcing
    # a tiny row tile: grid (2, 3) with a partial last tile and one fully
    # out-of-range (clamped + masked) tile.
    n2 = 37
    preds2 = jax.random.normal(k3, (n2, NUM_CLASSES), dtype=jnp.float32)
    labels2 = jax.random.randint(k4, (n2,), 0, NUM_CLASSES, dtype=jnp.int32)
    loss2 = poly1_cross_entropy(preds2, labels2, weight, epsilon=EPSILON,
                                size_average=True, block_rows=8)
    jax.block_until_ready(loss2)
    ref2 = _reference(preds2, labels2, weight, EPSILON, True)
    assert jnp.allclose(loss2, ref2, rtol=1e-5, atol=1e-5), (loss2, ref2)

    print("KERNEL_OK")
</pallas_src>

<mosaic_0001>
module attributes {stable_mosaic.version = 11 : i64} {
  func.func @_poly1_ce_partial_kernel(%arg0: i32, %arg1: i32, %arg2: memref<8x5xf32, #tpu.memory_space<vmem>>, %arg3: memref<8x2xf32, #tpu.memory_space<vmem>>, %arg4: memref<1x8x128xf32, #tpu.memory_space<vmem>>, %arg5: memref<1x1xf32, #tpu.memory_space<vmem>>, %arg6: memref<1x1xf32, #tpu.memory_space<vmem>>, %arg7: memref<1x1xf32, #tpu.memory_space<vmem>>) attributes {dimension_semantics = [#tpu.dimension_semantics<parallel>, #tpu.dimension_semantics<arbitrary>], iteration_bounds = array<i64: 1, 1>, scalar_prefetch = 0 : i64, scratch_operands = 3 : i64, tpu.core_type = #tpu.core_type<tc>, window_params = [{transform_indices = @transform_0, window_bounds = array<i64: 8, 5>}, {transform_indices = @transform_1, window_bounds = array<i64: 8, 2>}, {transform_indices = @transform_2, window_bounds = array<i64: 1, 8, 128>}]} {
    %c0_i32 = arith.constant 0 : i32
    %0 = arith.cmpi eq, %arg1, %c0_i32 : i32
    %1 = arith.extui %0 : i1 to i32
    %c0_i32_0 = arith.constant 0 : i32
    %2 = arith.cmpi ne, %1, %c0_i32_0 : i32
    scf.if %2 {
      %cst_24 = arith.constant 0.000000e+00 : f32
      %47 = vector.broadcast %cst_24 : f32 to vector<1x1xf32>
      %c0_25 = arith.constant 0 : index
      %c0_26 = arith.constant 0 : index
      %48 = vector.load %arg5[%c0_25, %c0_26] : memref<1x1xf32, #tpu.memory_space<vmem>>, vector<1x1xf32>
      tpu.vector_store %arg5[%c0_25, %c0_26], %47 {strides = array<i32>} : memref<1x1xf32, #tpu.memory_space<vmem>>, vector<1x1xf32>,
      %cst_27 = arith.constant 0.000000e+00 : f32
      %49 = vector.broadcast %cst_27 : f32 to vector<1x1xf32>
      %c0_28 = arith.constant 0 : index
      %c0_29 = arith.constant 0 : index
      %50 = vector.load %arg6[%c0_28, %c0_29] : memref<1x1xf32, #tpu.memory_space<vmem>>, vector<1x1xf32>
      tpu.vector_store %arg6[%c0_28, %c0_29], %49 {strides = array<i32>} : memref<1x1xf32, #tpu.memory_space<vmem>>, vector<1x1xf32>,
      %cst_30 = arith.constant 0.000000e+00 : f32
      %51 = vector.broadcast %cst_30 : f32 to vector<1x1xf32>
      %c0_31 = arith.constant 0 : index
      %c0_32 = arith.constant 0 : index
      %52 = vector.load %arg7[%c0_31, %c0_32] : memref<1x1xf32, #tpu.memory_space<vmem>>, vector<1x1xf32>
      tpu.vector_store %arg7[%c0_31, %c0_32], %51 {strides = array<i32>} : memref<1x1xf32, #tpu.memory_space<vmem>>, vector<1x1xf32>,
    } else {
    }
    %c0 = arith.constant 0 : index
    %c0_1 = arith.constant 0 : index
    %3 = vector.load %arg2[%c0, %c0_1] : memref<8x5xf32, #tpu.memory_space<vmem>>, vector<8x5xf32>
    %c0_2 = arith.constant 0 : index
    %c0_3 = arith.constant 0 : index
    %4 = vector.load %arg3[%c0_2, %c0_3] : memref<8x2xf32, #tpu.memory_space<vmem>>, vector<8x1xf32>
    %c0_4 = arith.constant 0 : index
    %c1 = arith.constant 1 : index
    %5 = vector.load %arg3[%c0_4, %c1] : memref<8x2xf32, #tpu.memory_space<vmem>>, vector<8x1xf32>
    %cst = arith.constant dense<0xFF800000> : vector<8xf32>
    %6 = vector.multi_reduction <maximumf>, %3, %cst [1] : vector<8x5xf32> to vector<8xf32>
    %7 = vector.shape_cast %6 : vector<8xf32> to vector<8x1xf32>
    %8 = vector.broadcast %7 : vector<8x1xf32> to vector<8x5xf32>
    %9 = arith.subf %3, %8 : vector<8x5xf32>
    %10 = math.exp %9 : vector<8x5xf32>
    %cst_5 = arith.constant dense<0.000000e+00> : vector<8xf32>
    %11 = vector.multi_reduction <add>, %10, %cst_5 [1] : vector<8x5xf32> to vector<8xf32>
    %12 = vector.shape_cast %11 : vector<8xf32> to vector<8x1xf32>
    %13 = math.log %12 : vector<8x1xf32>
    %14 = arith.addf %7, %13 : vector<8x1xf32>
    %15 = arith.subf %14, %4 : vector<8x1xf32>
    %cst_6 = arith.constant 0.000000e+00 : f32
    %16 = vector.broadcast %cst_6 : f32 to vector<8x1xf32>
    %17 = arith.subf %16, %15 : vector<8x1xf32>
    %18 = math.exp %17 : vector<8x1xf32>
    %19 = arith.mulf %5, %15 : vector<8x1xf32>
    %c0_7 = arith.constant 0 : index
    %c0_8 = arith.constant 0 : index
    %20 = vector.load %arg5[%c0_7, %c0_8] : memref<1x1xf32, #tpu.memory_space<vmem>>, vector<1x1xf32>
    %21 = vector.shape_cast %19 : vector<8x1xf32> to vector<1x8x1xf32>
    %cst_9 = arith.constant dense<0.000000e+00> : vector<1xf32>
    %22 = vector.multi_reduction <add>, %21, %cst_9 [1, 2] : vector<1x8x1xf32> to vector<1xf32>
    %23 = vector.shape_cast %22 : vector<1xf32> to vector<1x1x1xf32>
    %24 = vector.extract %23[0, 0, 0] : f32 from vector<1x1x1xf32>
    %25 = vector.broadcast %24 : f32 to vector<1x1xf32>
    %26 = arith.addf %20, %25 : vector<1x1xf32>
    %c0_10 = arith.constant 0 : index
    %c0_11 = arith.constant 0 : index
    %27 = vector.load %arg5[%c0_10, %c0_11] : memref<1x1xf32, #tpu.memory_space<vmem>>, vector<1x1xf32>
    tpu.vector_store %arg5[%c0_10, %c0_11], %26 {strides = array<i32>} : memref<1x1xf32, #tpu.memory_space<vmem>>, vector<1x1xf32>,
    %c0_12 = arith.constant 0 : index
    %c0_13 = arith.constant 0 : index
    %28 = vector.load %arg6[%c0_12, %c0_13] : memref<1x1xf32, #tpu.memory_space<vmem>>, vector<1x1xf32>
    %29 = vector.shape_cast %5 : vector<8x1xf32> to vector<1x8x1xf32>
    %cst_14 = arith.constant dense<0.000000e+00> : vector<1xf32>
    %30 = vector.multi_reduction <add>, %29, %cst_14 [1, 2] : vector<1x8x1xf32> to vector<1xf32>
    %31 = vector.shape_cast %30 : vector<1xf32> to vector<1x1x1xf32>
    %32 = vector.extract %31[0, 0, 0] : f32 from vector<1x1x1xf32>
    %33 = vector.broadcast %32 : f32 to vector<1x1xf32>
    %34 = arith.addf %28, %33 : vector<1x1xf32>
    %c0_15 = arith.constant 0 : index
    %c0_16 = arith.constant 0 : index
    %35 = vector.load %arg6[%c0_15, %c0_16] : memref<1x1xf32, #tpu.memory_space<vmem>>, vector<1x1xf32>
    tpu.vector_store %arg6[%c0_15, %c0_16], %34 {strides = array<i32>} : memref<1x1xf32, #tpu.memory_space<vmem>>, vector<1x1xf32>,
    %c0_17 = arith.constant 0 : index
    %c0_18 = arith.constant 0 : index
    %36 = vector.load %arg7[%c0_17, %c0_18] : memref<1x1xf32, #tpu.memory_space<vmem>>, vector<1x1xf32>
    %37 = vector.shape_cast %18 : vector<8x1xf32> to vector<1x8x1xf32>
    %cst_19 = arith.constant dense<0.000000e+00> : vector<1xf32>
    %38 = vector.multi_reduction <add>, %37, %cst_19 [1, 2] : vector<1x8x1xf32> to vector<1xf32>
    %39 = vector.shape_cast %38 : vector<1xf32> to vector<1x1x1xf32>
    %40 = vector.extract %39[0, 0, 0] : f32 from vector<1x1x1xf32>
    %41 = vector.broadcast %40 : f32 to vector<1x1xf32>
    %42 = arith.addf %36, %41 : vector<1x1xf32>
    %c0_20 = arith.constant 0 : index
    %c0_21 = arith.constant 0 : index
    %43 = vector.load %arg7[%c0_20, %c0_21] : memref<1x1xf32, #tpu.memory_space<vmem>>, vector<1x1xf32>
    tpu.vector_store %arg7[%c0_20, %c0_21], %42 {strides = array<i32>} : memref<1x1xf32, #tpu.memory_space<vmem>>, vector<1x1xf32>,
    %c0_i32_22 = arith.constant 0 : i32
    %44 = arith.cmpi eq, %arg1, %c0_i32_22 : i32
    %45 = arith.extui %44 : i1 to i32
    %c0_i32_23 = arith.constant 0 : i32
    %46 = arith.cmpi ne, %45, %c0_i32_23 : i32
    scf.if %46 {
      %47 = tpu.iota {dimensions = array<i32: 1>} : vector<1x8x128xi32>
      %c0_i32_24 = arith.constant 0 : i32
      %48 = vector.broadcast %c0_i32_24 : i32 to vector<1x8x128xi32>
      %49 = arith.cmpi eq, %47, %48 : vector<1x8x128xi32>
      %c0_25 = arith.constant 0 : index
      %c0_26 = arith.constant 0 : index
      %50 = vector.load %arg5[%c0_25, %c0_26] : memref<1x1xf32, #tpu.memory_space<vmem>>, vector<1x1xf32>
      %c1_i32 = arith.constant 1 : i32
      %51 = vector.broadcast %c1_i32 : i32 to vector<1x8x128xi32>
      %52 = arith.cmpi eq, %47, %51 : vector<1x8x128xi32>
      %c0_27 = arith.constant 0 : index
      %c0_28 = arith.constant 0 : index
      %53 = vector.load %arg6[%c0_27, %c0_28] : memref<1x1xf32, #tpu.memory_space<vmem>>, vector<1x1xf32>
      %c2_i32 = arith.constant 2 : i32
      %54 = vector.broadcast %c2_i32 : i32 to vector<1x8x128xi32>
      %55 = arith.cmpi eq, %47, %54 : vector<1x8x128xi32>
      %c0_29 = arith.constant 0 : index
      %c0_30 = arith.constant 0 : index
      %56 = vector.load %arg7[%c0_29, %c0_30] : memref<1x1xf32, #tpu.memory_space<vmem>>, vector<1x1xf32>
      %cst_31 = arith.constant 0.000000e+00 : f32
      %57 = vector.shape_cast %56 : vector<1x1xf32> to vector<1x1x1xf32>
      %58 = vector.broadcast %57 : vector<1x1x1xf32> to vector<1x8x128xf32>
      %59 = vector.broadcast %cst_31 : f32 to vector<1x8x128xf32>
      %60 = arith.select %55, %58, %59 : vector<1x8x128xi1>, vector<1x8x128xf32>
      %61 = vector.shape_cast %53 : vector<1x1xf32> to vector<1x1x1xf32>
      %62 = vector.broadcast %61 : vector<1x1x1xf32> to vector<1x8x128xf32>
      %63 = arith.select %52, %62, %60 : vector<1x8x128xi1>, vector<1x8x128xf32>
      %64 = vector.shape_cast %50 : vector<1x1xf32> to vector<1x1x1xf32>
      %65 = vector.broadcast %64 : vector<1x1x1xf32> to vector<1x8x128xf32>
      %66 = arith.select %49, %65, %63 : vector<1x8x128xi1>, vector<1x8x128xf32>
      %c0_32 = arith.constant 0 : index
      %c0_33 = arith.constant 0 : index
      %c0_34 = arith.constant 0 : index
      %67 = vector.load %arg4[%c0_32, %c0_33, %c0_34] : memref<1x8x128xf32, #tpu.memory_space<vmem>>, vector<1x8x128xf32>
      tpu.vector_store %arg4[%c0_32, %c0_33, %c0_34], %66 {strides = array<i32>} : memref<1x8x128xf32, #tpu.memory_space<vmem>>, vector<1x8x128xf32>,
    } else {
    }
    return
  }
  func.func @transform_0(%arg0: i32, %arg1: i32) -> (i32, i32) {
    %c1_i32 = arith.constant 1 : i32
    %0 = arith.muli %arg0, %c1_i32 : i32
    %1 = arith.addi %0, %arg1 : i32
    %c0_i32 = arith.constant 0 : i32
    %2 = arith.minsi %1, %c0_i32 : i32
    %c0_i32_0 = arith.constant 0 : i32
    %c0_i32_1 = arith.constant 0 : i32
    return %2, %c0_i32_0 : i32, i32
  }
  func.func @transform_1(%arg0: i32, %arg1: i32) -> (i32, i32) {
    %c1_i32 = arith.constant 1 : i32
    %0 = arith.muli %arg0, %c1_i32 : i32
    %1 = arith.addi %0, %arg1 : i32
    %c0_i32 = arith.constant 0 : i32
    %2 = arith.minsi %1, %c0_i32 : i32
    %c0_i32_0 = arith.constant 0 : i32
    %c0_i32_1 = arith.constant 0 : i32
    return %2, %c0_i32_0 : i32, i32
  }
  func.func @transform_2(%arg0: i32, %arg1: i32) -> (i32, i32, i32) {
    %c0_i32 = arith.constant 0 : i32
    %c0_i32_0 = arith.constant 0 : i32
    %c0_i32_1 = arith.constant 0 : i32
    return %arg0, %c0_i32, %c0_i32_0 : i32, i32, i32
  }
}

</mosaic_0001>

<llo_original>
// kernel: tpu_custom_call.1
$region0: #{tpu_custom_call.1}
  #allocation0 [shape = 'u32[]', space=smem, size = 0x4, offset = 0x4, fixed_abs, tag = 'smem constant byte address 0x4 - core index']
  #allocation1 [shape = 'u32[72,128]{1,0:T(1,128)}', space=vmem, size = 0x9000, scoped, tag = 'internal scratch']
  #allocation2 [shape = 'f32[1,1]{1,0:T(1,128)}', space=vmem, size = 0x200, scoped, tag = 'scratch operand']
  #allocation3 [shape = 'f32[1,1]{1,0:T(1,128)}', space=vmem, size = 0x200, scoped, tag = 'scratch operand']
  #allocation4 [shape = 'f32[1,1]{1,0:T(1,128)}', space=vmem, size = 0x200, scoped, tag = 'scratch operand']
  %s0 = inlined_call_operand.vmem [shape: f32[8,5], index: 0, kind: input, shape index: {}]
  %s1 = inlined_call_operand.vmem [shape: f32[8,2], index: 1, kind: input, shape index: {}]
  %s2 = inlined_call_operand.hbm [shape: f32[1,8,128], index: 2, kind: output, shape index: {}]
  %s3 = sld [smem:[#allocation0]]
  $region26: #{tpu_custom_call.1} parent=0
    _
  %s5 = ssub.s32 1, %s3
  %s6 = scalar_select 0, %s5, %s3
  $region1: #{tpu_custom_call.1} parent=0
    #allocation5 [shape = 'u8[4096]{0}', space=vmem, size = 0x1000, scoped, tag = 'output window, operand 0, single buffered']
    #allocation6 [shape = 's32[1]{0}', space=sflag, size = 0x4, scoped, tag = 'scoped memory for tpu_custom_call.1']
    %7 = vsyncpa [#allocation6], 0
    // Predicated region
    $region2: #{tpu_custom_call.1} parent=1 // pred_check
      _
    $region3: #{tpu_custom_call.1} parent=1 // pred_check_branch
      %9 = sbr.rel (0) target = $region5
    $region4: #{tpu_custom_call.1} parent=1 // pred_region
      %s10 = sadd.s32 0, 0
      %p11 = scmp.lt.s32.totalorder %s10, 0
      %s12 = scalar_select %p11, %s10, 0
      %p13 = scmp.lt.s32.totalorder %s12, 0
      %s14 = scalar_select %p13, %s12, 0
      %s15 = smul.addr %s14, 8
      %s16 = scalar_lea.vmem %s0, %s15
      %s17 = sadd.s32 0, 0
      %p18 = scmp.lt.s32.totalorder %s17, 0
      %s19 = scalar_select %p18, %s17, 0
    $region5: #{tpu_custom_call.1} parent=1 // pred_fallthru
      _
    // Predicated region
    $region6: #{tpu_custom_call.1} parent=1 // pred_check
      _
    $region7: #{tpu_custom_call.1} parent=1 // pred_check_branch
      %21 = sbr.rel (0) target = $region9
    $region8: #{tpu_custom_call.1} parent=1 // pred_region
      %s22 = sadd.s32 0, 0
      %p23 = scmp.lt.s32.totalorder %s22, 0
      %s24 = scalar_select %p23, %s22, 0
      %p25 = scmp.lt.s32.totalorder %s24, 0
      %s26 = scalar_select %p25, %s24, 0
      %s27 = smul.addr %s26, 8
      %s28 = scalar_lea.vmem %s1, %s27
      %s29 = sadd.s32 0, 0
      %p30 = scmp.lt.s32.totalorder %s29, 0
      %s31 = scalar_select %p30, %s29, 0
    $region9: #{tpu_custom_call.1} parent=1 // pred_fallthru
      _
    %s32 = sadd.s32 0, 0
    %p33 = scmp.lt.s32.totalorder %s32, 0
    %s34 = scalar_select %p33, %s32, 0
    %p35 = scmp.lt.s32.totalorder %s34, 0
    %s36 = scalar_select %p35, %s34, 0
    %s37 = smul.addr %s36, 8
    %s38 = scalar_lea.vmem %s0, %s37
    %s39 = sadd.s32 0, 0
    %p40 = scmp.lt.s32.totalorder %s39, 0
    %s41 = scalar_select %p40, %s39, 0
    %p42 = scmp.lt.s32.totalorder %s41, 0
    %s43 = scalar_select %p42, %s41, 0
    %s44 = smul.addr %s43, 8
    %s45 = scalar_lea.vmem %s1, %s44
    %s46 = sadd.s32 0, 0
    %p47 = scmp.lt.s32.totalorder %s46, 0
    %s48 = scalar_select %p47, %s46, 0
    %p49 = scmp.lt.s32.totalorder %s48, 0
    %s50 = scalar_select %p49, %s48, 0
    %s51 = smul.addr %s50, 8
    %s52 = scalar_lea.vmem %s0, %s51
    %s53 = sadd.s32 0, 0
    %p54 = scmp.lt.s32.totalorder %s53, 0
    %s55 = scalar_select %p54, %s53, 0
    %s56 = sadd.s32 0, 0
    %p57 = scmp.lt.s32.totalorder %s56, 0
    %s58 = scalar_select %p57, %s56, 0
    %p59 = scmp.lt.s32.totalorder %s58, 0
    %s60 = scalar_select %p59, %s58, 0
    %s61 = smul.addr %s60, 8
    %s62 = scalar_lea.vmem %s1, %s61
    %s63 = sadd.s32 0, 0
    %p64 = scmp.lt.s32.totalorder %s63, 0
    %s65 = scalar_select %p64, %s63, 0
    %p66 = scmp.eq.s32.totalorder 0, 0
    // Predicated region
    $region10: #{tpu_custom_call.1} parent=1 // pred_check
      %p67 = pneg %p66
    $region11: #{tpu_custom_call.1} parent=1 // pred_check_branch
      %69 = sbr.rel (%p67) target = $region13
    $region12: #{tpu_custom_call.1} parent=1 // pred_region
      %vm70 = vcmask 0
      %71 = vst.msk [vmem:[#allocation2] sm:$0x1] %vm70, 0.0
      %72 = vst.msk [vmem:[#allocation3] sm:$0x1] %vm70, 0.0
      %73 = vst.msk [vmem:[#allocation4] sm:$0x1] %vm70, 0.0
    $region13: #{tpu_custom_call.1} parent=1 // pred_fallthru
      _
    %v74 = vld [vmem:[%s52] sm:$0xff]
    %v75 = vld [vmem:[%s62] sm:$0xff]
    %vm76 = vcmask 39936
    %v77 = vsel %vm76, %v74, -inf
    %78 = vmax.xlane.f32.xlu0 %v77
    %v79 = vpop.xlane.xlu0 %78
    %v80 = vsub.f32 %v74, %v79
    %v81 = vmul.f32 %v80, 1.442695
    %v82 = vpow.pop %v81
    %v83 = vsel %vm76, %v82, 0.0
    %84 = vadd.xlane.f32.xlu0 %v83
    %v85 = vpop.xlane.xlu0 %84
    %v86 = vlog2.pop %v85
    %v87 = vmul.f32 %v86, 0.6931472
    %v88 = vadd.f32 %v79, %v87
    %v89 = vsub.f32 %v88, %v75
    %v90 = vsub.f32 0.0, %v89
    %v91 = vmul.f32 %v90, 1.442695
    %v92 = vpow.pop %v91
    %94 = vrot.lane.b32.xlu0 %v89, 1
    %v95 = vpop.permute.xlu0 %94
    %v97 = vmul.f32 %v75, %v95
    %v98 = vld [vmem:[#allocation2] sm:$0x1]
    %100 = vrot.lane.b32.xlu0 %v97, 127
    %v101 = vpop.permute.xlu0 %100
    %vm103 = vcmask 7168
    %v104 = vsel %vm103, %v101, 0.0
    %105 = vadd.xlane.f32.xlu0 %v104
    %v106 = vpop.xlane.xlu0 %105
    %v107 = vrot.slane %v106, 4
    %v108 = vadd.f32 %v106, %v107
    %v109 = vrot.slane %v108, 2
    %v110 = vadd.f32 %v108, %v109
    %v111 = vrot.slane %v110, 1
    %v112 = vadd.f32 %v110, %v111
    %s113 = vtos %v112
    %v114 = vstv %s113
    %v115 = vadd.f32 %v98, %v114
    %vm116 = vcmask 0
    %117 = vst.msk [vmem:[#allocation2] sm:$0x1] %vm116, %v115
    %v118 = vld [vmem:[#allocation3] sm:$0x1]
    %120 = vrot.lane.b32.xlu0 %v75, 127
    %v121 = vpop.permute.xlu0 %120
    %v123 = vsel %vm103, %v121, 0.0
    %124 = vadd.xlane.f32.xlu0 %v123
    %v125 = vpop.xlane.xlu0 %124
    %v126 = vrot.slane %v125, 4
    %v127 = vadd.f32 %v125, %v126
    %v128 = vrot.slane %v127, 2
    %v129 = vadd.f32 %v127, %v128
    %v130 = vrot.slane %v129, 1
    %v131 = vadd.f32 %v129, %v130
    %s132 = vtos %v131
    %v133 = vstv %s132
    %v134 = vadd.f32 %v118, %v133
    %135 = vst.msk [vmem:[#allocation3] sm:$0x1] %vm116, %v134
    %v136 = vld [vmem:[#allocation4] sm:$0x1]
    %v137 = vsel %vm103, %v92, 0.0
    %138 = vadd.xlane.f32.xlu0 %v137
    %v139 = vpop.xlane.xlu0 %138
    %v140 = vrot.slane %v139, 4
    %v141 = vadd.f32 %v139, %v140
    %v142 = vrot.slane %v141, 2
    %v143 = vadd.f32 %v141, %v142
    %v144 = vrot.slane %v143, 1
    %v145 = vadd.f32 %v143, %v144
    %s146 = vtos %v145
    %v147 = vstv %s146
    %v148 = vadd.f32 %v136, %v147
    %149 = vst.msk [vmem:[#allocation4] sm:$0x1] %vm116, %v148
    // Predicated region
    $region14: #{tpu_custom_call.1} parent=1 // pred_check
      %p150 = pneg %p66
    $region15: #{tpu_custom_call.1} parent=1 // pred_check_branch
      %152 = sbr.rel (%p150) target = $region17
    $region16: #{tpu_custom_call.1} parent=1 // pred_region
      %v153 = vlaneseq
      %v154 = vshrl.u32 %v153, 7
      %vm155 = vcmp.eq.s32.totalorder %v154, 0
      %v156 = vld [vmem:[#allocation2] sm:$0x1]
      %vm157 = vcmp.eq.s32.totalorder %v154, 1
      %v158 = vld [vmem:[#allocation3] sm:$0x1]
      %vm159 = vcmp.eq.s32.totalorder %v154, 2
      %v160 = vld [vmem:[#allocation4] sm:$0x1]
      %v162 = vperm.slane %v160, 0
      %163 = vset.pattern.permute.xlu0 0
      %164 = vperm.xlu0 %163, %v162
      %v165 = vpop.permute.xlu0 %164
      %v167 = vsel %vm159, %v165, 0.0
      %v169 = vperm.slane %v158, 0
      %170 = vset.pattern.permute.xlu0 0
      %171 = vperm.xlu0 %170, %v169
      %v172 = vpop.permute.xlu0 %171
      %v174 = vsel %vm157, %v172, %v167
      %v176 = vperm.slane %v156, 0
      %177 = vset.pattern.permute.xlu0 0
      %178 = vperm.xlu0 %177, %v176
      %v179 = vpop.permute.xlu0 %178
      %v181 = vsel %vm155, %v179, %v174
      %182 = vst [vmem:[#allocation5] sm:$0xff] %v181
    $region17: #{tpu_custom_call.1} parent=1 // pred_fallthru
      _
    // Predicated region
    $region18: #{tpu_custom_call.1} parent=1 // pred_check
      _
    $region19: #{tpu_custom_call.1} parent=1 // pred_check_branch
      %184 = sbr.rel (0) target = $region21
    $region20: #{tpu_custom_call.1} parent=1 // pred_region
      %186 = vsyncadd [#allocation6], 0
      %s188 = sshll.u32 [#allocation5], 4
      %s189 = int_to_ptr.vmem [resolvable:$true] %s188
      %s190 = sshll.u32 %s2, 4
      %s191 = int_to_ptr.hbm [resolvable:$true] %s190
      %193 = dma.vmem_to_hbm [thread:$0]  %s189, 128, %s191, [#allocation6]
    $region21: #{tpu_custom_call.1} parent=1 // pred_fallthru
      _
    // Predicated region
    $region22: #{tpu_custom_call.1} parent=1 // pred_check
      _
    $region23: #{tpu_custom_call.1} parent=1 // pred_check_branch
      %195 = sbr.rel (0) target = $region25
    $region24: #{tpu_custom_call.1} parent=1 // pred_region
      %197 = dma.done [#allocation6], 128
    $region25: #{tpu_custom_call.1} parent=1 // pred_fallthru
      _
    %198 = vsyncpa [#allocation6], 1

</llo_original>
